<compile_context>
chip_gen: v7x
topology: tpu7x:2x2x1
jax: 0.10.0
libtpu: 0.0.40
codegen_flags: <defaults>
</compile_context>

<pallas_src>
import jax
import jax.numpy as jnp
from jax.experimental import pallas as pl
from jax.experimental.pallas import tpu as pltpu


def _round_up(x, m):
    return (x + m - 1) // m * m


def _cdiv(a, b):
    return -(-a // b)


# --------------------------------------------------------------------------
# Kernel: one MXU matmul per (tm, tn) output tile, f32 accumulation, bias
# fused in the epilogue.  Used both for the full-weight path (tn == N_pad,
# weight VMEM-resident) and the column-tiled path (tn < N_pad).
# --------------------------------------------------------------------------
def _fused_forecast_kernel(x_ref, w_ref, b_ref, o_ref):
    acc = jnp.dot(x_ref[...], w_ref[...], preferred_element_type=jnp.float32)
    o_ref[...] = (acc + b_ref[...]).astype(o_ref.dtype)


def _vmem_budget_bytes():
    """Generation-aware (tiling budget, vmem_limit cap) in bytes."""
    try:
        cap = int(pltpu.get_tpu_info().vmem_capacity_bytes)
    except Exception:   # info unavailable -> assume the smallest (v7x) VMEM
        cap = 64 * 1024 * 1024
    if cap >= 96 * 1024 * 1024:       # v5e / v6e: 128 MiB physical VMEM
        return 96 * 1024 * 1024, 100 * 1024 * 1024
    # v7x: 64 MiB per TensorCore -> leave headroom for Mosaic internal scratch
    return 44 * 1024 * 1024, 52 * 1024 * 1024


def _choose_tile_m(M, row_bytes, resident_bytes, budget):
    """Largest row tile (multiple of 8) whose double-buffered x/out tiles plus
    the VMEM-resident weight bytes fit `budget`.  Tiles are balanced so M is
    barely padded, and >=2 row tiles are kept when M allows it so both v7x
    TensorCores get work under dimension_semantics="parallel"."""
    m_cap = _round_up(max(M, 8), 8)
    tm = 8
    for cand in (4096, 2048, 1024, 512, 256, 128, 64, 32, 16, 8):
        if resident_bytes + 2 * cand * row_bytes <= budget:
            tm = cand
            break
    tm = min(tm, m_cap)
    n_tiles = _cdiv(m_cap, tm)
    if n_tiles == 1 and m_cap >= 16 and m_cap % 16 == 0:
        n_tiles = 2
    return _round_up(_cdiv(m_cap, n_tiles), 8)


def prepare_fused_params(params, compute_dtype=jnp.bfloat16):
    """Collapse decomp + model into one affine map, pad and cast the weights.

    Call this ONCE per parameter set (O(K*N^2 + N^3) f32 work); the per-step
    forward then only runs the row-tile matmul kernel.
    """
    f32 = jnp.float32
    wd = params["wd"].astype(f32)          # (K, N, N)
    bd = params["bd"].astype(f32)          # (K, N)
    wm = params["wm"].astype(f32)          # (N, N)
    bm = params["bm"].astype(f32)          # (N,)
    K, N, _ = wd.shape
    w_eff = jnp.sum(wd, axis=0) @ wm                       # (N, N)
    b_eff = jnp.sum(bd, axis=0) @ wm + K * bm              # (N,)

    N_pad = _round_up(N, 128)
    pad = N_pad - N
    w_pad = w_eff.astype(compute_dtype)
    if pad:
        w_pad = jnp.pad(w_pad, ((0, pad), (0, pad)))
        b_eff = jnp.pad(b_eff, (0, pad))
    return {
        "w": w_pad,                        # (N_pad, N_pad) compute_dtype
        "b": b_eff.reshape(1, N_pad),      # (1, N_pad) f32 (added post-matmul)
        "n": N,
        "n_pad": N_pad,
        "compute_dtype": jnp.dtype(compute_dtype),
    }


def input_decomposition_forward(x, x_mark_enc, x_dec, x_mark_dec, fused,
                                out_dtype=None):
    """Pallas equivalent of input_decomposition_wrapper.forward.

    `fused` comes from prepare_fused_params (weight fusion hoisted out of the
    per-call path).  x_mark_enc / x_dec / x_mark_dec are accepted for API
    parity; the synthetic linear forecasting model does not consume them.
    """
    # TODO(synk): interpretable_outputs stash (out.detach().cpu()) is host-side
    # bookkeeping with no Pallas equivalent; not implemented.
    del x_mark_enc, x_dec, x_mark_dec
    B, C, N = x.shape
    assert N == fused["n"], "sequence length does not match the fused params"
    N_pad = fused["n_pad"]
    compute_dtype = fused["compute_dtype"]
    out_dtype = jnp.dtype(x.dtype if out_dtype is None else out_dtype)
    in_bytes = compute_dtype.itemsize
    out_bytes = out_dtype.itemsize
    M = B * C
    budget, limit_cap = _vmem_budget_bytes()

    # ---- column tiling: keep the whole fused weight VMEM-resident (one copy,
    # pl.Buffered(1)) when it fits; otherwise tile the output columns in
    # 256-aligned strips (full MXU width on v6e/v7x).
    def _fits(tn_cand, copies):
        resident = copies * (N_pad * tn_cand * in_bytes + tn_cand * 4)
        return (resident + 2 * 8 * (N_pad * in_bytes + tn_cand * out_bytes)
                <= budget)

    if _fits(N_pad, 1):
        tn, w_copies = N_pad, 1
    else:
        tn, w_copies = None, 2
        for cand in (2048, 1024, 512, 256, 128):
            if N_pad % cand == 0 and _fits(cand, 2):
                tn = cand
                break
        if tn is None:
            # TODO(synk): add a contraction grid axis for sequence lengths this
            # large; not needed for the shapes this wrapper is used with.
            raise ValueError(
                "fused (N_pad, N_pad) weight does not fit the VMEM budget even "
                "with 128-wide column strips (N_pad=%d)" % N_pad)

    row_bytes = N_pad * in_bytes + tn * out_bytes
    tm = _choose_tile_m(M, row_bytes,
                        w_copies * (N_pad * tn * in_bytes + tn * 4), budget)
    M_pad = _round_up(max(M, tm), tm)

    # ---- host-side layout: pad only the ragged remainder (skipped entirely
    # when x is already (8,128)-aligned -> no extra HBM pass over x / output).
    x_flat = x.reshape(M, N).astype(compute_dtype)
    pad_m, pad_n = M_pad - M, N_pad - N
    x_in = (jnp.pad(x_flat, ((0, pad_m), (0, pad_n)))
            if (pad_m or pad_n) else x_flat)

    cost = pl.CostEstimate(
        flops=2 * M_pad * N_pad * N_pad,
        transcendentals=0,
        bytes_accessed=(M_pad * N_pad * (in_bytes + out_bytes)
                        + N_pad * N_pad * in_bytes + N_pad * 4),
    )

    def _run(single_buffer_weight):
        # Fused weight/bias block index is constant when tn == N_pad, so they
        # can be single-buffered -> halves the dominant VMEM consumer.
        spec_kwargs = ({"pipeline_mode": pl.Buffered(1)}
                       if single_buffer_weight else {})
        copies = 1 if single_buffer_weight else 2
        need = (copies * (N_pad * tn * in_bytes + tn * 4)
                + 2 * tm * row_bytes)
        vmem_limit = int(min(max(need + (2 << 20), 16 << 20), limit_cap))
        return pl.pallas_call(
            _fused_forecast_kernel,
            out_shape=jax.ShapeDtypeStruct((M_pad, N_pad), out_dtype),
            grid_spec=pltpu.PrefetchScalarGridSpec(
                num_scalar_prefetch=0,
                grid=(M_pad // tm, N_pad // tn),
                in_specs=[
                    pl.BlockSpec((tm, N_pad), lambda m, n: (m, 0)),   # x rows
                    pl.BlockSpec((N_pad, tn), lambda m, n: (0, n),    # weight
                                 **spec_kwargs),
                    pl.BlockSpec((1, tn), lambda m, n: (0, n),        # bias
                                 **spec_kwargs),
                ],
                out_specs=pl.BlockSpec((tm, tn), lambda m, n: (m, n)),
            ),
            compiler_params=pltpu.CompilerParams(
                dimension_semantics=("parallel", "parallel"),
                vmem_limit_bytes=vmem_limit,
            ),
            cost_estimate=cost,
        )(x_in, fused["w"], fused["b"])

    if tn == N_pad:
        try:
            out_pad = _run(True)
        except Exception:
            # pl.Buffered(1) not supported by this jax build -> fall back to
            # default double-buffering (identical semantics, more VMEM).
            out_pad = _run(False)
    else:
        out_pad = _run(False)

    out = out_pad if (pad_m == 0 and pad_n == 0) else out_pad[:M, :N]
    return out.reshape(B, C, N)


def reference_forward(x, params):
    """Plain-JAX mirror of the PyTorch wrapper's permute/reshape/sum flow."""
    B, C, N = x.shape
    K = params["wd"].shape[0]
    decomposed = (jnp.einsum("bcn,knm->kbcm", x, params["wd"])
                  + params["bd"][:, None, None, :])            # (K, B, C, N)
    reshaped = jnp.transpose(decomposed, (1, 0, 2, 3))          # (B, K, C, N)
    merged = reshaped.reshape(B, K * C, N)
    forecast = jnp.einsum("bcn,nm->bcm", merged, params["wm"]) + params["bm"]
    unmerged = forecast.reshape(B, K, C, N)
    out = jnp.transpose(unmerged, (1, 0, 2, 3))                 # (K, B, C, N)
    return jnp.sum(out, axis=0)


if __name__ == "__main__":
    B, C, N, K = 2, 4, 16, 3   # batch, channels, seq-len, n_components

    key = jax.random.PRNGKey(0)
    kx, kwd, kbd, kwm, kbm, kme, kxd, kmd = jax.random.split(key, 8)

    x = jax.random.normal(kx, (B, C, N), dtype=jnp.float32)
    # Extra forecasting inputs (unused by the synthetic linear model).
    x_mark_enc = jax.random.normal(kme, (B, N, 4), dtype=jnp.float32)
    x_dec = jax.random.normal(kxd, (B, C, N), dtype=jnp.float32)
    x_mark_dec = jax.random.normal(kmd, (B, N, 4), dtype=jnp.float32)

    params = {
        "wd": jax.random.normal(kwd, (K, N, N), dtype=jnp.float32) * 0.1,
        "bd": jax.random.normal(kbd, (K, N), dtype=jnp.float32) * 0.1,
        "wm": jax.random.normal(kwm, (N, N), dtype=jnp.float32) * 0.1,
        "bm": jax.random.normal(kbm, (N,), dtype=jnp.float32) * 0.1,
    }

    # Weight fusion / padding / bf16 cast is hoisted out of the per-call path.
    fused = prepare_fused_params(params)

    out = input_decomposition_forward(x, x_mark_enc, x_dec, x_mark_dec, fused)
    out = jax.block_until_ready(out)

    ref = reference_forward(x, params)
    assert out.shape == (B, C, N)
    # bf16 fused weight + f32 accumulation -> bf16-level tolerance vs f32 ref.
    assert jnp.allclose(out, ref, atol=3e-2, rtol=3e-2), "mismatch vs reference"

    print("KERNEL_OK")
</pallas_src>

<mosaic_0001>
module attributes {stable_mosaic.version = 11 : i64} {
  func.func @_fused_forecast_kernel(%arg0: i32, %arg1: i32, %arg2: memref<8x128xbf16, #tpu.memory_space<vmem>>, %arg3: memref<128x128xbf16, #tpu.memory_space<vmem>>, %arg4: memref<1x128xf32, #tpu.memory_space<vmem>>, %arg5: memref<8x128xf32, #tpu.memory_space<vmem>>) attributes {dimension_semantics = [#tpu.dimension_semantics<parallel>, #tpu.dimension_semantics<parallel>], iteration_bounds = array<i64: 1, 1>, scalar_prefetch = 0 : i64, scratch_operands = 0 : i64, tpu.core_type = #tpu.core_type<tc>, window_params = [{transform_indices = @transform_0, window_bounds = array<i64: 8, 128>}, {pipeline_mode = #tpu.pipeline_mode<synchronous>, transform_indices = @transform_1, window_bounds = array<i64: 128, 128>}, {pipeline_mode = #tpu.pipeline_mode<synchronous>, transform_indices = @transform_2, window_bounds = array<i64: 1, 128>}, {transform_indices = @transform_3, window_bounds = array<i64: 8, 128>}]} {
    %c0 = arith.constant 0 : index
    %c0_0 = arith.constant 0 : index
    %0 = vector.load %arg2[%c0, %c0_0] : memref<8x128xbf16, #tpu.memory_space<vmem>>, vector<8x128xbf16>
    %c0_1 = arith.constant 0 : index
    %c0_2 = arith.constant 0 : index
    %1 = vector.load %arg3[%c0_1, %c0_2] : memref<128x128xbf16, #tpu.memory_space<vmem>>, vector<128x128xbf16>
    %cst = arith.constant dense<0.000000e+00> : vector<8x128xf32>
    %2 = tpu.matmul %0, %1, %cst {dimension_numbers = #tpu.dot_dimension_numbers<[1], [0], [0], [1], [0, 0, 1, 1], [], []>} : vector<8x128xbf16>, vector<128x128xbf16>, vector<8x128xf32> -> vector<8x128xf32>
    %c0_3 = arith.constant 0 : index
    %c0_4 = arith.constant 0 : index
    %3 = vector.load %arg4[%c0_3, %c0_4] : memref<1x128xf32, #tpu.memory_space<vmem>>, vector<1x128xf32>
    %4 = vector.broadcast %3 : vector<1x128xf32> to vector<8x128xf32>
    %5 = arith.addf %2, %4 : vector<8x128xf32>
    %c0_5 = arith.constant 0 : index
    %c0_6 = arith.constant 0 : index
    %6 = vector.load %arg5[%c0_5, %c0_6] : memref<8x128xf32, #tpu.memory_space<vmem>>, vector<8x128xf32>
    tpu.vector_store %arg5[%c0_5, %c0_6], %5 {strides = array<i32>} : memref<8x128xf32, #tpu.memory_space<vmem>>, vector<8x128xf32>,
    return
  }
  func.func @transform_0(%arg0: i32, %arg1: i32) -> (i32, i32) {
    %c0_i32 = arith.constant 0 : i32
    %c0_i32_0 = arith.constant 0 : i32
    return %arg0, %c0_i32 : i32, i32
  }
  func.func @transform_1(%arg0: i32, %arg1: i32) -> (i32, i32) {
    %c0_i32 = arith.constant 0 : i32
    %c0_i32_0 = arith.constant 0 : i32
    return %c0_i32, %arg1 : i32, i32
  }
  func.func @transform_2(%arg0: i32, %arg1: i32) -> (i32, i32) {
    %c0_i32 = arith.constant 0 : i32
    %c0_i32_0 = arith.constant 0 : i32
    return %c0_i32, %arg1 : i32, i32
  }
  func.func @transform_3(%arg0: i32, %arg1: i32) -> (i32, i32) {
    %c0_i32 = arith.constant 0 : i32
    return %arg0, %arg1 : i32, i32
  }
}

module attributes {stable_mosaic.version = 11 : i64} {
  func.func @_fused_forecast_kernel(%arg0: i32, %arg1: i32, %arg2: memref<8x128xbf16, #tpu.memory_space<vmem>>, %arg3: memref<128x128xbf16, #tpu.memory_space<vmem>>, %arg4: memref<1x128xf32, #tpu.memory_space<vmem>>, %arg5: memref<8x128xf32, #tpu.memory_space<vmem>>) attributes {dimension_semantics = [#tpu.dimension_semantics<parallel>, #tpu.dimension_semantics<parallel>], iteration_bounds = array<i64: 1, 1>, scalar_prefetch = 0 : i64, scratch_operands = 0 : i64, tpu.core_type = #tpu.core_type<tc>, window_params = [{transform_indices = @transform_0, window_bounds = array<i64: 8, 128>}, {transform_indices = @transform_1, window_bounds = array<i64: 128, 128>}, {transform_indices = @transform_2, window_bounds = array<i64: 1, 128>}, {transform_indices = @transform_3, window_bounds = array<i64: 8, 128>}]} {
    %c0 = arith.constant 0 : index
    %c0_0 = arith.constant 0 : index
    %0 = vector.load %arg2[%c0, %c0_0] : memref<8x128xbf16, #tpu.memory_space<vmem>>, vector<8x128xbf16>
    %c0_1 = arith.constant 0 : index
    %c0_2 = arith.constant 0 : index
    %1 = vector.load %arg3[%c0_1, %c0_2] : memref<128x128xbf16, #tpu.memory_space<vmem>>, vector<128x128xbf16>
    %cst = arith.constant dense<0.000000e+00> : vector<8x128xf32>
    %2 = tpu.matmul %0, %1, %cst {dimension_numbers = #tpu.dot_dimension_numbers<[1], [0], [0], [1], [0, 0, 1, 1], [], []>} : vector<8x128xbf16>, vector<128x128xbf16>, vector<8x128xf32> -> vector<8x128xf32>
    %c0_3 = arith.constant 0 : index
    %c0_4 = arith.constant 0 : index
    %3 = vector.load %arg4[%c0_3, %c0_4] : memref<1x128xf32, #tpu.memory_space<vmem>>, vector<1x128xf32>
    %4 = vector.broadcast %3 : vector<1x128xf32> to vector<8x128xf32>
    %5 = arith.addf %2, %4 : vector<8x128xf32>
    %c0_5 = arith.constant 0 : index
    %c0_6 = arith.constant 0 : index
    %6 = vector.load %arg5[%c0_5, %c0_6] : memref<8x128xf32, #tpu.memory_space<vmem>>, vector<8x128xf32>
    tpu.vector_store %arg5[%c0_5, %c0_6], %5 {strides = array<i32>} : memref<8x128xf32, #tpu.memory_space<vmem>>, vector<8x128xf32>,
    return
  }
  func.func @transform_0(%arg0: i32, %arg1: i32) -> (i32, i32) {
    %c0_i32 = arith.constant 0 : i32
    %c0_i32_0 = arith.constant 0 : i32
    return %arg0, %c0_i32 : i32, i32
  }
  func.func @transform_1(%arg0: i32, %arg1: i32) -> (i32, i32) {
    %c0_i32 = arith.constant 0 : i32
    %c0_i32_0 = arith.constant 0 : i32
    return %c0_i32, %arg1 : i32, i32
  }
  func.func @transform_2(%arg0: i32, %arg1: i32) -> (i32, i32) {
    %c0_i32 = arith.constant 0 : i32
    %c0_i32_0 = arith.constant 0 : i32
    return %c0_i32, %arg1 : i32, i32
  }
  func.func @transform_3(%arg0: i32, %arg1: i32) -> (i32, i32) {
    %c0_i32 = arith.constant 0 : i32
    return %arg0, %arg1 : i32, i32
  }
}

</mosaic_0001>

<llo_original>
// kernel: tpu_custom_call.1
$region0: #{tpu_custom_call.1}
  #allocation0 [shape = 'u32[]', space=smem, size = 0x4, offset = 0x4, fixed_abs, tag = 'smem constant byte address 0x4 - core index']
  #allocation1 [shape = 'u32[144,128]{1,0:T(1,128)}', space=vmem, size = 0x12000, scoped, tag = 'internal scratch']
  %s0 = inlined_call_operand.hbm [shape: bf16[8,128], index: 0, kind: input, shape index: {}]
  %s1 = inlined_call_operand.hbm [shape: bf16[128,128], index: 1, kind: input, shape index: {}]
  %s2 = inlined_call_operand.vmem [shape: f32[1,128], index: 2, kind: input, shape index: {}]
  %s3 = inlined_call_operand.hbm [shape: f32[8,128], index: 3, kind: output, shape index: {}]
  %s4 = sld [smem:[#allocation0]]
  $region30: #{tpu_custom_call.1} parent=0
    _
  %s6 = ssub.s32 1, %s4
  %s7 = scalar_select 0, %s6, %s4
  $region1: #{tpu_custom_call.1} parent=0
    #allocation2 [shape = 'u8[2048]{0}', space=vmem, size = 0x800, scoped, tag = 'input window, operand 0, single buffered']
    #allocation3 [shape = 's32[1]{0}', space=sflag, size = 0x4, scoped, tag = 'scoped memory for tpu_custom_call.1']
    #allocation4 [shape = 's32[1]{0}', space=sflag, size = 0x4, scoped, tag = 'scoped memory for tpu_custom_call.1']
    #allocation5 [shape = 'u8[32768]{0}', space=vmem, size = 0x8000, scoped, tag = 'input window, operand 1, single buffered']
    #allocation6 [shape = 's32[1]{0}', space=sflag, size = 0x4, scoped, tag = 'scoped memory for tpu_custom_call.1']
    #allocation7 [shape = 'u8[4096]{0}', space=vmem, size = 0x1000, scoped, tag = 'output window, operand 0, single buffered']
    %8 = vsyncpa [#allocation3], 0
    %9 = vsyncpa [#allocation6], 0
    %10 = vsyncpa [#allocation4], 0
    // Predicated region
    $region2: #{tpu_custom_call.1} parent=1 // pred_check
      _
    $region3: #{tpu_custom_call.1} parent=1 // pred_check_branch
      %12 = sbr.rel (0) target = $region5
    $region4: #{tpu_custom_call.1} parent=1 // pred_region
      %s14 = ssub.s32 64, 64
      %15 = vsyncadd [#allocation3], %s14
      %s17 = sshll.u32 [#allocation2], 4
      %s18 = int_to_ptr.vmem [resolvable:$true] %s17
      %20 = dma.hbm_to_vmem [thread:$0]  %s0, 64, %s18, [#allocation3]
    $region5: #{tpu_custom_call.1} parent=1 // pred_fallthru
      _
    // Predicated region
    $region6: #{tpu_custom_call.1} parent=1 // pred_check
      _
    $region7: #{tpu_custom_call.1} parent=1 // pred_check_branch
      %22 = sbr.rel (0) target = $region9
    $region8: #{tpu_custom_call.1} parent=1 // pred_region
      %s24 = ssub.s32 1024, 1024
      %25 = vsyncadd [#allocation6], %s24
      %s26 = sshll.u32 [#allocation5], 4
      %s27 = int_to_ptr.vmem [resolvable:$true] %s26
      %32 = dma.hbm_to_vmem [thread:$0]  %s1, 1024, %s27, [#allocation6], 64, 64, 4
    $region9: #{tpu_custom_call.1} parent=1 // pred_fallthru
      _
    // Predicated region
    $region10: #{tpu_custom_call.1} parent=1 // pred_check
      _
    $region11: #{tpu_custom_call.1} parent=1 // pred_check_branch
      %34 = sbr.rel (0) target = $region13
    $region12: #{tpu_custom_call.1} parent=1 // pred_region
      _
    $region13: #{tpu_custom_call.1} parent=1 // pred_fallthru
      _
    // Predicated region
    $region14: #{tpu_custom_call.1} parent=1 // pred_check
      _
    $region15: #{tpu_custom_call.1} parent=1 // pred_check_branch
      %36 = sbr.rel (0) target = $region17
    $region16: #{tpu_custom_call.1} parent=1 // pred_region
      %37 = dma.done [#allocation3], 64
    $region17: #{tpu_custom_call.1} parent=1 // pred_fallthru
      _
    // Predicated region
    $region18: #{tpu_custom_call.1} parent=1 // pred_check
      _
    $region19: #{tpu_custom_call.1} parent=1 // pred_check_branch
      %39 = sbr.rel (0) target = $region21
    $region20: #{tpu_custom_call.1} parent=1 // pred_region
      %40 = dma.done [#allocation6], 1024
    $region21: #{tpu_custom_call.1} parent=1 // pred_fallthru
      _
    %v42 = vld [vmem:[#allocation2] sm:$0xf]
    %v43 = vld [vmem:[#allocation5] sm:$0xf]
    %v44 = vld [vmem:[#allocation5 + $0x4] sm:$0xf]
    %v45 = vld [vmem:[#allocation5 + $0x8] sm:$0xf]
    %v46 = vld [vmem:[#allocation5 + $0xc] sm:$0xf]
    %v47 = vld [vmem:[#allocation5 + $0x10] sm:$0xf]
    %v48 = vld [vmem:[#allocation5 + $0x14] sm:$0xf]
    %v49 = vld [vmem:[#allocation5 + $0x18] sm:$0xf]
    %v50 = vld [vmem:[#allocation5 + $0x1c] sm:$0xf]
    %v51 = vld [vmem:[#allocation5 + $0x20] sm:$0xf]
    %v52 = vld [vmem:[#allocation5 + $0x24] sm:$0xf]
    %v53 = vld [vmem:[#allocation5 + $0x28] sm:$0xf]
    %v54 = vld [vmem:[#allocation5 + $0x2c] sm:$0xf]
    %v55 = vld [vmem:[#allocation5 + $0x30] sm:$0xf]
    %v56 = vld [vmem:[#allocation5 + $0x34] sm:$0xf]
    %v57 = vld [vmem:[#allocation5 + $0x38] sm:$0xf]
    %v58 = vld [vmem:[#allocation5 + $0x3c] sm:$0xf]
    %v59 = vld [vmem:[%s2] sm:$0x1]
    %v61 = vlaneseq
    %v62 = vshrl.u32 %v61, 7
    %v63 = vsub.s32 0, %v62
    %v64 = vrot.slane %v59, %v63
    %v82 = vunpack.c.l.b16 %v43
    %v83 = vunpack.c.l.b16 %v44
    %v84 = vunpack.c.l.b16 %v45
    %v85 = vunpack.c.l.b16 %v46
    %v86 = vunpack.c.l.b16 %v47
    %v87 = vunpack.c.l.b16 %v48
    %v88 = vunpack.c.l.b16 %v49
    %v89 = vunpack.c.l.b16 %v50
    %v90 = vunpack.c.l.b16 %v51
    %v91 = vunpack.c.l.b16 %v52
    %v92 = vunpack.c.l.b16 %v53
    %v93 = vunpack.c.l.b16 %v54
    %v94 = vunpack.c.l.b16 %v55
    %v95 = vunpack.c.l.b16 %v56
    %v96 = vunpack.c.l.b16 %v57
    %v97 = vunpack.c.l.b16 %v58
    %v98 = vpack.c.b16 %v83, %v82
    %v99 = vpack.c.b16 %v85, %v84
    %v100 = vpack.c.b16 %v87, %v86
    %v101 = vpack.c.b16 %v89, %v88
    %v102 = vpack.c.b16 %v91, %v90
    %v103 = vpack.c.b16 %v93, %v92
    %v104 = vpack.c.b16 %v95, %v94
    %v105 = vpack.c.b16 %v97, %v96
    %114 = vmatprep.subr.bf16.mxu0 0
    %115 = vmatpush1.bf16.msra.mxu0 %v98
    %116 = vmatprep.subr.bf16.mxu0 0
    %117 = vmatpush1.bf16.msra.mxu0 %v99
    %118 = vmatprep.subr.bf16.mxu0 0
    %119 = vmatpush1.bf16.msra.mxu0 %v100
    %120 = vmatprep.subr.bf16.mxu0 0
    %121 = vmatpush1.bf16.msra.mxu0 %v101
    %122 = vmatprep.subr.bf16.mxu0 0
    %123 = vmatpush1.bf16.msra.mxu0 %v102
    %124 = vmatprep.subr.bf16.mxu0 0
    %125 = vmatpush1.bf16.msra.mxu0 %v103
    %126 = vmatprep.subr.bf16.mxu0 0
    %127 = vmatpush1.bf16.msra.mxu0 %v104
    %128 = vmatprep.subr.bf16.mxu0 0
    %129 = vmatpush1.bf16.msra.mxu0 %v105
    %130 = vmatprep.subr.bf16.mxu0 0
    %131 = vmatpush1.bf16.msra.mxu0 0
    %132 = vmatprep.subr.bf16.mxu0 0
    %133 = vmatpush1.bf16.msra.mxu0 0
    %134 = vmatprep.subr.bf16.mxu0 0
    %135 = vmatpush1.bf16.msra.mxu0 0
    %136 = vmatprep.subr.bf16.mxu0 0
    %137 = vmatpush1.bf16.msra.mxu0 0
    %138 = vmatprep.subr.bf16.mxu0 0
    %139 = vmatpush1.bf16.msra.mxu0 0
    %140 = vmatprep.subr.bf16.mxu0 0
    %141 = vmatpush1.bf16.msra.mxu0 0
    %142 = vmatprep.subr.bf16.mxu0 0
    %143 = vmatpush1.bf16.msra.mxu0 0
    %144 = vmatprep.subr.bf16.mxu0 0
    %145 = vmatpush1.bf16.msra.mxu0 0
    %146 = vmatprep.mubr.bf16.mxu0 0
    %147 = vmatmul.mubr.bf16.gmra.mrb[0].mxu0 %v42
    %v148 = vpop.f32.mrb[0].mxu0
    %v149 = vadd.f32 %v64, %v148
    %v150 = vpop.f32.mrb[0].mxu0
    %v151 = vpop.f32.mrb[0].mxu0
    %v152 = vpop.f32.mrb[0].mxu0
    %153 = vdwg.mxu0
    %154 = vst [vmem:[#allocation7] sm:$0xff] %v149
    // Predicated region
    $region22: #{tpu_custom_call.1} parent=1 // pred_check
      _
    $region23: #{tpu_custom_call.1} parent=1 // pred_check_branch
      %156 = sbr.rel (0) target = $region25
    $region24: #{tpu_custom_call.1} parent=1 // pred_region
      %s158 = ssub.s32 128, 128
      %159 = vsyncadd [#allocation4], %s158
      %s161 = sshll.u32 [#allocation7], 4
      %s162 = int_to_ptr.vmem [resolvable:$true] %s161
      %164 = dma.vmem_to_hbm [thread:$0]  %s162, 128, %s3, [#allocation4]
    $region25: #{tpu_custom_call.1} parent=1 // pred_fallthru
      _
    // Predicated region
    $region26: #{tpu_custom_call.1} parent=1 // pred_check
      _
    $region27: #{tpu_custom_call.1} parent=1 // pred_check_branch
      %166 = sbr.rel (0) target = $region29
    $region28: #{tpu_custom_call.1} parent=1 // pred_region
      %167 = dma.done [#allocation4], 128
    $region29: #{tpu_custom_call.1} parent=1 // pred_fallthru
      _
    %168 = vsyncpa [#allocation3], 1
    %169 = vsyncpa [#allocation6], 1
    %170 = vsyncpa [#allocation4], 1

// kernel: tpu_custom_call.1
$region0: #{tpu_custom_call.1}
  #allocation0 [shape = 'u32[]', space=smem, size = 0x4, offset = 0x4, fixed_abs, tag = 'smem constant byte address 0x4 - core index']
  #allocation1 [shape = 'u32[144,128]{1,0:T(1,128)}', space=vmem, size = 0x12000, scoped, tag = 'internal scratch']
  %s0 = inlined_call_operand.hbm [shape: bf16[8,128], index: 0, kind: input, shape index: {}]
  %s1 = inlined_call_operand.hbm [shape: bf16[128,128], index: 1, kind: input, shape index: {}]
  %s2 = inlined_call_operand.vmem [shape: f32[1,128], index: 2, kind: input, shape index: {}]
  %s3 = inlined_call_operand.hbm [shape: f32[8,128], index: 3, kind: output, shape index: {}]
  %s4 = sld [smem:[#allocation0]]
  $region30: #{tpu_custom_call.1} parent=0
    _
  %s6 = ssub.s32 1, %s4
  %s7 = scalar_select 0, %s6, %s4
  $region1: #{tpu_custom_call.1} parent=0
    #allocation2 [shape = 'u8[2048]{0}', space=vmem, size = 0x800, scoped, tag = 'input window, operand 0, single buffered']
    #allocation3 [shape = 's32[1]{0}', space=sflag, size = 0x4, scoped, tag = 'scoped memory for tpu_custom_call.1']
    #allocation4 [shape = 's32[1]{0}', space=sflag, size = 0x4, scoped, tag = 'scoped memory for tpu_custom_call.1']
    #allocation5 [shape = 'u8[32768]{0}', space=vmem, size = 0x8000, scoped, tag = 'input window, operand 1, single buffered']
    #allocation6 [shape = 's32[1]{0}', space=sflag, size = 0x4, scoped, tag = 'scoped memory for tpu_custom_call.1']
    #allocation7 [shape = 'u8[4096]{0}', space=vmem, size = 0x1000, scoped, tag = 'output window, operand 0, single buffered']
    %8 = vsyncpa [#allocation3], 0
    %9 = vsyncpa [#allocation6], 0
    %10 = vsyncpa [#allocation4], 0
    // Predicated region
    $region2: #{tpu_custom_call.1} parent=1 // pred_check
      _
    $region3: #{tpu_custom_call.1} parent=1 // pred_check_branch
      %12 = sbr.rel (0) target = $region5
    $region4: #{tpu_custom_call.1} parent=1 // pred_region
      %s14 = ssub.s32 64, 64
      %15 = vsyncadd [#allocation3], %s14
      %s17 = sshll.u32 [#allocation2], 4
      %s18 = int_to_ptr.vmem [resolvable:$true] %s17
      %20 = dma.hbm_to_vmem [thread:$0]  %s0, 64, %s18, [#allocation3]
    $region5: #{tpu_custom_call.1} parent=1 // pred_fallthru
      _
    // Predicated region
    $region6: #{tpu_custom_call.1} parent=1 // pred_check
      _
    $region7: #{tpu_custom_call.1} parent=1 // pred_check_branch
      %22 = sbr.rel (0) target = $region9
    $region8: #{tpu_custom_call.1} parent=1 // pred_region
      %s24 = ssub.s32 1024, 1024
      %25 = vsyncadd [#allocation6], %s24
      %s26 = sshll.u32 [#allocation5], 4
      %s27 = int_to_ptr.vmem [resolvable:$true] %s26
      %32 = dma.hbm_to_vmem [thread:$0]  %s1, 1024, %s27, [#allocation6], 64, 64, 4
    $region9: #{tpu_custom_call.1} parent=1 // pred_fallthru
      _
    // Predicated region
    $region10: #{tpu_custom_call.1} parent=1 // pred_check
      _
    $region11: #{tpu_custom_call.1} parent=1 // pred_check_branch
      %34 = sbr.rel (0) target = $region13
    $region12: #{tpu_custom_call.1} parent=1 // pred_region
      _
    $region13: #{tpu_custom_call.1} parent=1 // pred_fallthru
      _
    // Predicated region
    $region14: #{tpu_custom_call.1} parent=1 // pred_check
      _
    $region15: #{tpu_custom_call.1} parent=1 // pred_check_branch
      %36 = sbr.rel (0) target = $region17
    $region16: #{tpu_custom_call.1} parent=1 // pred_region
      %37 = dma.done [#allocation3], 64
    $region17: #{tpu_custom_call.1} parent=1 // pred_fallthru
      _
    // Predicated region
    $region18: #{tpu_custom_call.1} parent=1 // pred_check
      _
    $region19: #{tpu_custom_call.1} parent=1 // pred_check_branch
      %39 = sbr.rel (0) target = $region21
    $region20: #{tpu_custom_call.1} parent=1 // pred_region
      %40 = dma.done [#allocation6], 1024
    $region21: #{tpu_custom_call.1} parent=1 // pred_fallthru
      _
    %v42 = vld [vmem:[#allocation2] sm:$0xf]
    %v43 = vld [vmem:[#allocation5] sm:$0xf]
    %v44 = vld [vmem:[#allocation5 + $0x4] sm:$0xf]
    %v45 = vld [vmem:[#allocation5 + $0x8] sm:$0xf]
    %v46 = vld [vmem:[#allocation5 + $0xc] sm:$0xf]
    %v47 = vld [vmem:[#allocation5 + $0x10] sm:$0xf]
    %v48 = vld [vmem:[#allocation5 + $0x14] sm:$0xf]
    %v49 = vld [vmem:[#allocation5 + $0x18] sm:$0xf]
    %v50 = vld [vmem:[#allocation5 + $0x1c] sm:$0xf]
    %v51 = vld [vmem:[#allocation5 + $0x20] sm:$0xf]
    %v52 = vld [vmem:[#allocation5 + $0x24] sm:$0xf]
    %v53 = vld [vmem:[#allocation5 + $0x28] sm:$0xf]
    %v54 = vld [vmem:[#allocation5 + $0x2c] sm:$0xf]
    %v55 = vld [vmem:[#allocation5 + $0x30] sm:$0xf]
    %v56 = vld [vmem:[#allocation5 + $0x34] sm:$0xf]
    %v57 = vld [vmem:[#allocation5 + $0x38] sm:$0xf]
    %v58 = vld [vmem:[#allocation5 + $0x3c] sm:$0xf]
    %v59 = vld [vmem:[%s2] sm:$0x1]
    %v61 = vlaneseq
    %v62 = vshrl.u32 %v61, 7
    %v63 = vsub.s32 0, %v62
    %v64 = vrot.slane %v59, %v63
    %v82 = vunpack.c.l.b16 %v43
    %v83 = vunpack.c.l.b16 %v44
    %v84 = vunpack.c.l.b16 %v45
    %v85 = vunpack.c.l.b16 %v46
    %v86 = vunpack.c.l.b16 %v47
    %v87 = vunpack.c.l.b16 %v48
    %v88 = vunpack.c.l.b16 %v49
    %v89 = vunpack.c.l.b16 %v50
    %v90 = vunpack.c.l.b16 %v51
    %v91 = vunpack.c.l.b16 %v52
    %v92 = vunpack.c.l.b16 %v53
    %v93 = vunpack.c.l.b16 %v54
    %v94 = vunpack.c.l.b16 %v55
    %v95 = vunpack.c.l.b16 %v56
    %v96 = vunpack.c.l.b16 %v57
    %v97 = vunpack.c.l.b16 %v58
    %v98 = vpack.c.b16 %v83, %v82
    %v99 = vpack.c.b16 %v85, %v84
    %v100 = vpack.c.b16 %v87, %v86
    %v101 = vpack.c.b16 %v89, %v88
    %v102 = vpack.c.b16 %v91, %v90
    %v103 = vpack.c.b16 %v93, %v92
    %v104 = vpack.c.b16 %v95, %v94
    %v105 = vpack.c.b16 %v97, %v96
    %114 = vmatprep.subr.bf16.mxu0 0
    %115 = vmatpush1.bf16.msra.mxu0 %v98
    %116 = vmatprep.subr.bf16.mxu0 0
    %117 = vmatpush1.bf16.msra.mxu0 %v99
    %118 = vmatprep.subr.bf16.mxu0 0
    %119 = vmatpush1.bf16.msra.mxu0 %v100
    %120 = vmatprep.subr.bf16.mxu0 0
    %121 = vmatpush1.bf16.msra.mxu0 %v101
    %122 = vmatprep.subr.bf16.mxu0 0
    %123 = vmatpush1.bf16.msra.mxu0 %v102
    %124 = vmatprep.subr.bf16.mxu0 0
    %125 = vmatpush1.bf16.msra.mxu0 %v103
    %126 = vmatprep.subr.bf16.mxu0 0
    %127 = vmatpush1.bf16.msra.mxu0 %v104
    %128 = vmatprep.subr.bf16.mxu0 0
    %129 = vmatpush1.bf16.msra.mxu0 %v105
    %130 = vmatprep.subr.bf16.mxu0 0
    %131 = vmatpush1.bf16.msra.mxu0 0
    %132 = vmatprep.subr.bf16.mxu0 0
    %133 = vmatpush1.bf16.msra.mxu0 0
    %134 = vmatprep.subr.bf16.mxu0 0
    %135 = vmatpush1.bf16.msra.mxu0 0
    %136 = vmatprep.subr.bf16.mxu0 0
    %137 = vmatpush1.bf16.msra.mxu0 0
    %138 = vmatprep.subr.bf16.mxu0 0
    %139 = vmatpush1.bf16.msra.mxu0 0
    %140 = vmatprep.subr.bf16.mxu0 0
    %141 = vmatpush1.bf16.msra.mxu0 0
    %142 = vmatprep.subr.bf16.mxu0 0
    %143 = vmatpush1.bf16.msra.mxu0 0
    %144 = vmatprep.subr.bf16.mxu0 0
    %145 = vmatpush1.bf16.msra.mxu0 0
    %146 = vmatprep.mubr.bf16.mxu0 0
    %147 = vmatmul.mubr.bf16.gmra.mrb[0].mxu0 %v42
    %v148 = vpop.f32.mrb[0].mxu0
    %v149 = vadd.f32 %v64, %v148
    %v150 = vpop.f32.mrb[0].mxu0
    %v151 = vpop.f32.mrb[0].mxu0
    %v152 = vpop.f32.mrb[0].mxu0
    %153 = vdwg.mxu0
    %154 = vst [vmem:[#allocation7] sm:$0xff] %v149
    // Predicated region
    $region22: #{tpu_custom_call.1} parent=1 // pred_check
      _
    $region23: #{tpu_custom_call.1} parent=1 // pred_check_branch
      %156 = sbr.rel (0) target = $region25
    $region24: #{tpu_custom_call.1} parent=1 // pred_region
      %s158 = ssub.s32 128, 128
      %159 = vsyncadd [#allocation4], %s158
      %s161 = sshll.u32 [#allocation7], 4
      %s162 = int_to_ptr.vmem [resolvable:$true] %s161
      %164 = dma.vmem_to_hbm [thread:$0]  %s162, 128, %s3, [#allocation4]
    $region25: #{tpu_custom_call.1} parent=1 // pred_fallthru
      _
    // Predicated region
    $region26: #{tpu_custom_call.1} parent=1 // pred_check
      _
    $region27: #{tpu_custom_call.1} parent=1 // pred_check_branch
      %166 = sbr.rel (0) target = $region29
    $region28: #{tpu_custom_call.1} parent=1 // pred_region
      %167 = dma.done [#allocation4], 128
    $region29: #{tpu_custom_call.1} parent=1 // pred_fallthru
      _
    %168 = vsyncpa [#allocation3], 1
    %169 = vsyncpa [#allocation6], 1
    %170 = vsyncpa [#allocation4], 1

</llo_original>
